<compile_context>
chip_gen: v5e
topology: v5e:2x2
jax: 0.10.0
libtpu: 0.0.40
codegen_flags: <defaults>
</compile_context>

<pallas_src>
import jax
import jax.numpy as jnp
from jax import lax
from jax.experimental import pallas as pl
from jax.experimental.pallas import tpu as pltpu

EMBEDDING_DIM = 10                       # walk length (module default)
L_PAD = ((EMBEDDING_DIM + 7) // 8) * 8   # sublane-aligned walk axis (= 16)
NUM_NODES = 128                          # graph size (lane-friendly)
HIDDEN = 32                              # skip-gram hidden size
DEGREE = 8                               # fixed out-degree of synthetic graph
BATCH = 8                                # walks per forward in the demo


# ----------------------------- Pallas kernel ------------------------------ #
def skipgram_kernel(ids_ref, w_in_ref, w_out_t_ref, logit_ref):
    """SkipGram hot path for one walk (one grid step).

    ids_ref     : VMEM (L_PAD, 1)          int32  padded neighbor ids (-1 = pad)
    w_in_ref    : VMEM (NUM_NODES, HIDDEN) f32    input embedding table
    w_out_t_ref : VMEM (HIDDEN, NUM_NODES) f32    output table, pre-transposed
    logit_ref   : VMEM (L_PAD, NUM_NODES)  f32    per-node logits
    """
    ids = ids_ref[...]                                            # (L_PAD, 1)
    # Gather rows of w_in via a one-hot matmul (MXU).  Sentinel id -1 matches
    # no node -> padded rows produce all-zero logits (sliced off outside).
    node_iota = lax.broadcasted_iota(jnp.int32, (L_PAD, NUM_NODES), 1)
    one_hot = (node_iota == ids).astype(jnp.float32)              # (L_PAD, N)
    walk_emb = jnp.dot(one_hot, w_in_ref[...],
                       preferred_element_type=jnp.float32)        # (L_PAD, H)
    # Skip-gram logits; RHS already lane-dense along N (no in-kernel .T).
    logit_ref[...] = jnp.dot(walk_emb, w_out_t_ref[...],
                             preferred_element_type=jnp.float32)  # (L_PAD, N)


def skipgram_logits(ids_padded, w_in, w_out_t):
    """ids_padded: (B, L_PAD, 1) int32 -> logits (B, L_PAD, NUM_NODES) f32."""
    b = ids_padded.shape[0]
    return pl.pallas_call(
        skipgram_kernel,
        out_shape=jax.ShapeDtypeStruct((b, L_PAD, NUM_NODES), jnp.float32),
        grid=(b,),
        in_specs=[
            pl.BlockSpec((None, L_PAD, 1), lambda i: (i, 0, 0)),
            # Grid-invariant index maps: tables are DMA'd into VMEM once and
            # reused across all grid steps (no per-step re-fetch).
            pl.BlockSpec((NUM_NODES, HIDDEN), lambda i: (0, 0)),
            pl.BlockSpec((HIDDEN, NUM_NODES), lambda i: (0, 0)),
        ],
        out_specs=pl.BlockSpec((None, L_PAD, NUM_NODES), lambda i: (i, 0, 0)),
        compiler_params=pltpu.CompilerParams(
            dimension_semantics=("parallel",)),  # v7x: 2 TCs split the batch
    )(ids_padded, w_in, w_out_t)


# ------------------------- jitted forward (glue) --------------------------- #
@jax.jit
def _deepwalk_forward(key, node_ids, neighbors, w_in, w_out_t):
    """Sample EMBEDDING_DIM random neighbors per node and score them."""
    b = node_ids.shape[0]
    # Single batched RNG dispatch for all B * EMBEDDING_DIM draws.
    idx = jax.random.randint(key, (b, EMBEDDING_DIM), 0, DEGREE)
    ids = neighbors[node_ids[:, None], idx].astype(jnp.int32)     # (B, L)
    # Pad walk axis 10 -> 16 with sentinel -1 (matches no node).
    pad = jnp.full((b, L_PAD - EMBEDDING_DIM), -1, jnp.int32)
    ids_padded = jnp.concatenate([ids, pad], axis=1).reshape(b, L_PAD, 1)
    logits = skipgram_logits(ids_padded, w_in, w_out_t)           # Pallas
    return logits[:, :EMBEDDING_DIM, :], ids


# ------------------------------ JAX-side glue ------------------------------ #
class Graph:
    """Synthetic fixed-degree graph with deterministic random neighbor draws."""

    def __init__(self, neighbors, key):
        self.neighbors = neighbors          # (NUM_NODES, DEGREE) int32
        self._key = key

    def next_key(self):
        self._key, sub = jax.random.split(self._key)
        return sub

    def get_random_neighbor(self, node_id):     # kept for API compatibility
        sub = self.next_key()
        idx = jax.random.randint(sub, (), 0, DEGREE)
        return self.neighbors[node_id, idx]


class DeepWalk:
    """JAX/Pallas port of the PyTorch DeepWalk module."""

    def __init__(self, embedding_dim=EMBEDDING_DIM, param_key=None):
        assert embedding_dim == EMBEDDING_DIM
        self.embedding_dim = embedding_dim
        if param_key is None:
            param_key = jax.random.PRNGKey(0)
        k_in, k_out = jax.random.split(param_key)
        # Deterministic synthetic skip-gram parameters.
        self.w_in = jax.random.normal(k_in, (NUM_NODES, HIDDEN), jnp.float32) * 0.1
        self.w_out = jax.random.normal(k_out, (NUM_NODES, HIDDEN), jnp.float32) * 0.1
        # Pre-transposed output table (host side): kernel RHS is (H, N),
        # lane-dense along the 128-node axis -> no in-kernel transpose.
        self.w_out_t = jnp.transpose(self.w_out)

    def forward(self, graph, node_id):
        node_ids = jnp.atleast_1d(jnp.asarray(node_id, dtype=jnp.int32))
        logits, ids = _deepwalk_forward(graph.next_key(), node_ids,
                                        graph.neighbors, self.w_in, self.w_out_t)
        if jnp.ndim(node_id) == 0:          # original single-node semantics
            return logits[0], ids[0]
        return logits, ids


# --------------------------------- main ----------------------------------- #
if __name__ == "__main__":
    key = jax.random.PRNGKey(0)
    k_graph, k_params = jax.random.split(key)

    # Deterministic synthetic neighbor table: neighbors[n, d] = (n + d + 1) % N
    n_iota = jnp.arange(NUM_NODES, dtype=jnp.int32)[:, None]
    d_iota = jnp.arange(DEGREE, dtype=jnp.int32)[None, :]
    neighbor_table = (n_iota + d_iota + 1) % NUM_NODES

    graph = Graph(neighbor_table, k_graph)
    model = DeepWalk(embedding_dim=EMBEDDING_DIM, param_key=k_params)

    # Batched path: BATCH walks scored by a single pallas_call (grid over B).
    node_ids = jnp.array([3, 7, 42, 99, 0, 64, 17, 5], dtype=jnp.int32)
    logits, ids = model.forward(graph, node_ids)
    logits = jax.block_until_ready(logits)

    ref = model.w_in[ids] @ model.w_out.T                 # (B, L, N) reference
    assert logits.shape == (BATCH, EMBEDDING_DIM, NUM_NODES)
    assert jnp.allclose(logits, ref, atol=1e-5, rtol=1e-5)

    # Single-node path (original module signature: forward(graph, node_id)).
    logit1, ids1 = model.forward(graph, 3)
    logit1 = jax.block_until_ready(logit1)
    ref1 = model.w_in[ids1] @ model.w_out.T
    assert logit1.shape == (EMBEDDING_DIM, NUM_NODES)
    assert jnp.allclose(logit1, ref1, atol=1e-5, rtol=1e-5)

    print("KERNEL_OK")
</pallas_src>

<mosaic_0001>
module attributes {stable_mosaic.version = 11 : i64} {
  func.func @skipgram_kernel(%arg0: i32, %arg1: memref<1x16x1xi32, #tpu.memory_space<vmem>>, %arg2: memref<128x32xf32, #tpu.memory_space<vmem>>, %arg3: memref<32x128xf32, #tpu.memory_space<vmem>>, %arg4: memref<1x16x128xf32, #tpu.memory_space<vmem>>) attributes {dimension_semantics = [#tpu.dimension_semantics<parallel>], iteration_bounds = array<i64: 8>, scalar_prefetch = 0 : i64, scratch_operands = 0 : i64, tpu.core_type = #tpu.core_type<tc>, window_params = [{transform_indices = @transform_0, window_bounds = array<i64: 1, 16, 1>}, {pipeline_mode = #tpu.pipeline_mode<synchronous>, transform_indices = @transform_1, window_bounds = array<i64: 128, 32>}, {pipeline_mode = #tpu.pipeline_mode<synchronous>, transform_indices = @transform_2, window_bounds = array<i64: 32, 128>}, {transform_indices = @transform_3, window_bounds = array<i64: 1, 16, 128>}]} {
    %c0 = arith.constant 0 : index
    %c0_0 = arith.constant 0 : index
    %c0_1 = arith.constant 0 : index
    %0 = vector.load %arg1[%c0, %c0_0, %c0_1] : memref<1x16x1xi32, #tpu.memory_space<vmem>>, vector<1x16x1xi32>
    %1 = vector.shape_cast %0 : vector<1x16x1xi32> to vector<16x1xi32>
    %2 = tpu.iota {dimensions = array<i32: 1>} : vector<16x128xi32>
    %3 = vector.broadcast %1 : vector<16x1xi32> to vector<16x128xi32>
    %4 = arith.cmpi eq, %2, %3 : vector<16x128xi32>
    %5 = arith.extui %4 : vector<16x128xi1> to vector<16x128xi32>
    %6 = arith.sitofp %5 : vector<16x128xi32> to vector<16x128xf32>
    %c0_2 = arith.constant 0 : index
    %c0_3 = arith.constant 0 : index
    %7 = vector.load %arg2[%c0_2, %c0_3] : memref<128x32xf32, #tpu.memory_space<vmem>>, vector<128x32xf32>
    %cst = arith.constant dense<0.000000e+00> : vector<16x32xf32>
    %8 = tpu.matmul %6, %7, %cst {dimension_numbers = #tpu.dot_dimension_numbers<[1], [0], [0], [1], [0, 0, 1, 1], [], []>} : vector<16x128xf32>, vector<128x32xf32>, vector<16x32xf32> -> vector<16x32xf32>
    %c0_4 = arith.constant 0 : index
    %c0_5 = arith.constant 0 : index
    %9 = vector.load %arg3[%c0_4, %c0_5] : memref<32x128xf32, #tpu.memory_space<vmem>>, vector<32x128xf32>
    %cst_6 = arith.constant dense<0.000000e+00> : vector<16x128xf32>
    %10 = tpu.matmul %8, %9, %cst_6 {dimension_numbers = #tpu.dot_dimension_numbers<[1], [0], [0], [1], [0, 0, 1, 1], [], []>} : vector<16x32xf32>, vector<32x128xf32>, vector<16x128xf32> -> vector<16x128xf32>
    %c0_7 = arith.constant 0 : index
    %c0_8 = arith.constant 0 : index
    %c0_9 = arith.constant 0 : index
    %11 = vector.load %arg4[%c0_7, %c0_8, %c0_9] : memref<1x16x128xf32, #tpu.memory_space<vmem>>, vector<1x16x128xf32>
    %12 = vector.shape_cast %11 : vector<1x16x128xf32> to vector<16x128xf32>
    %13 = vector.shape_cast %10 : vector<16x128xf32> to vector<1x16x128xf32>
    tpu.vector_store %arg4[%c0_7, %c0_8, %c0_9], %13 {strides = array<i32>} : memref<1x16x128xf32, #tpu.memory_space<vmem>>, vector<1x16x128xf32>,
    return
  }
  func.func @transform_0(%arg0: i32) -> (i32, i32, i32) {
    %c0_i32 = arith.constant 0 : i32
    %c0_i32_0 = arith.constant 0 : i32
    %c0_i32_1 = arith.constant 0 : i32
    return %arg0, %c0_i32, %c0_i32_0 : i32, i32, i32
  }
  func.func @transform_1(%arg0: i32) -> (i32, i32) {
    %c0_i32 = arith.constant 0 : i32
    %c0_i32_0 = arith.constant 0 : i32
    %c0_i32_1 = arith.constant 0 : i32
    return %c0_i32, %c0_i32_0 : i32, i32
  }
  func.func @transform_2(%arg0: i32) -> (i32, i32) {
    %c0_i32 = arith.constant 0 : i32
    %c0_i32_0 = arith.constant 0 : i32
    %c0_i32_1 = arith.constant 0 : i32
    return %c0_i32, %c0_i32_0 : i32, i32
  }
  func.func @transform_3(%arg0: i32) -> (i32, i32, i32) {
    %c0_i32 = arith.constant 0 : i32
    %c0_i32_0 = arith.constant 0 : i32
    %c0_i32_1 = arith.constant 0 : i32
    return %arg0, %c0_i32, %c0_i32_0 : i32, i32, i32
  }
}

</mosaic_0001>

<llo_original>
// kernel: _deepwalk_forward.1
$region0: #{_deepwalk_forward.1}
  #allocation0 [shape = 'u32[]', space=smem, size = 0x4, offset = 0x4, fixed_abs, tag = 'smem constant byte address 0x4 - core index']
  #allocation1 [shape = 'u32[72,128]{1,0:T(1,128)}', space=vmem, size = 0x9000, scoped, tag = 'internal scratch']
  %s0 = inlined_call_operand.vmem [shape: s32[8,16,1], index: 0, kind: input, shape index: {}]
  %s1 = inlined_call_operand.vmem [shape: f32[128,32], index: 1, kind: input, shape index: {}]
  %s2 = inlined_call_operand.vmem [shape: f32[32,128], index: 2, kind: input, shape index: {}]
  %s3 = inlined_call_operand.vmem [shape: f32[8,16,128], index: 3, kind: output, shape index: {}]
  %s4 = sld [smem:[#allocation0]]
  $region45: #{_deepwalk_forward.1} parent=0
    _
  %s6 = ssub.s32 1, %s4
  %s7 = scalar_select 0, %s6, %s4
  loop: start=0, step=1, limit=10
  $region2: #{_deepwalk_forward.1} parent=0 // loop_pre_header
    _
  $region3: #{_deepwalk_forward.1} parent=0 // loop_header
    %s9 = sphi 0, %s13
    %p10 = scmp.ge.s32.totalorder %s9, 10
    %s19 = sphi 0, %s21
    %s22 = sphi 0, %s19
    %s23 = sphi 0, %s22
    %s39 = sphi 0, %s23
    %s43 = sphi 0, %s43
    %s45 = sphi 0, %s43
    %s46 = sphi 0, %s45
    %s60 = sphi 0, %s46
    %s64 = sphi 0, %s64
    %s66 = sphi 0, %s64
    %s67 = sphi 0, %s66
    %s81 = sphi 0, %s67
    %s87 = sphi 0, %s89
    %s90 = sphi 0, %s87
    %s91 = sphi 0, %s90
    %s107 = sphi 0, %s91
  $region4: #{_deepwalk_forward.1} parent=0 // loop_header_branch
    %12 = sbr.rel (%p10) target = $region8
  $region5: #{_deepwalk_forward.1} parent=0 // loop_body
    %s14 = ssub.s32 %s9, 1
    %s15 = ssub.s32 %s9, 2
    %s16 = sadd.s32 %s9, 1
    %s17 = ssub.s32 %s9, %s16
    %p18 = scmp.eq.s32.totalorder %s17, 0
    %s20 = sadd.s32 %s19, 1
    %s21 = scalar_select %p18, %s19, %s20
    %p24 = pneg %p18
    %p25 = scmp.eq.s32.totalorder %s9, 7
    %p26 = por %p24, %p25
    %p27 = scmp.ne.s32.totalorder %s19, %s22
    %p28 = scmp.eq.s32.totalorder %s9, 0
    %p29 = por %p27, %p28
    %p30 = scmp.ne.s32.totalorder %s19, %s22
    %p31 = scmp.eq.s32.totalorder %s14, 7
    %p32 = por %p30, %p31
    %p33 = scmp.ne.s32.totalorder %s22, %s23
    %p34 = scmp.eq.s32.totalorder %s14, 0
    %p35 = por %p33, %p34
    %p36 = scmp.ne.s32.totalorder %s22, %s23
    %p37 = scmp.eq.s32.totalorder %s15, 7
    %p38 = por %p36, %p37
    %p40 = scmp.ne.s32.totalorder %s23, %s39
    %p41 = scmp.eq.s32.totalorder %s15, 0
    %p42 = por %p40, %p41
    %s44 = sadd.s32 %s43, 1
    %p47 = scmp.eq.s32.totalorder %s9, 7
    %p48 = scmp.ne.s32.totalorder %s43, %s45
    %p49 = scmp.eq.s32.totalorder %s9, 0
    %p50 = por %p48, %p49
    %p51 = scmp.ne.s32.totalorder %s43, %s45
    %p52 = scmp.eq.s32.totalorder %s14, 7
    %p53 = por %p51, %p52
    %p54 = scmp.ne.s32.totalorder %s45, %s46
    %p55 = scmp.eq.s32.totalorder %s14, 0
    %p56 = por %p54, %p55
    %p57 = scmp.ne.s32.totalorder %s45, %s46
    %p58 = scmp.eq.s32.totalorder %s15, 7
    %p59 = por %p57, %p58
    %p61 = scmp.ne.s32.totalorder %s46, %s60
    %p62 = scmp.eq.s32.totalorder %s15, 0
    %p63 = por %p61, %p62
    %s65 = sadd.s32 %s64, 1
    %p68 = scmp.eq.s32.totalorder %s9, 7
    %p69 = scmp.ne.s32.totalorder %s64, %s66
    %p70 = scmp.eq.s32.totalorder %s9, 0
    %p71 = por %p69, %p70
    %p72 = scmp.ne.s32.totalorder %s64, %s66
    %p73 = scmp.eq.s32.totalorder %s14, 7
    %p74 = por %p72, %p73
    %p75 = scmp.ne.s32.totalorder %s66, %s67
    %p76 = scmp.eq.s32.totalorder %s14, 0
    %p77 = por %p75, %p76
    %p78 = scmp.ne.s32.totalorder %s66, %s67
    %p79 = scmp.eq.s32.totalorder %s15, 7
    %p80 = por %p78, %p79
    %p82 = scmp.ne.s32.totalorder %s67, %s81
    %p83 = scmp.eq.s32.totalorder %s15, 0
    %p84 = por %p82, %p83
    %s85 = ssub.s32 %s9, %s16
    %p86 = scmp.eq.s32.totalorder %s85, 0
    %s88 = sadd.s32 %s87, 1
    %s89 = scalar_select %p86, %s87, %s88
    %p92 = pneg %p86
    %p93 = scmp.eq.s32.totalorder %s9, 7
    %p94 = por %p92, %p93
    %p95 = scmp.ne.s32.totalorder %s87, %s90
    %p96 = scmp.eq.s32.totalorder %s9, 0
    %p97 = por %p95, %p96
    %p98 = scmp.ne.s32.totalorder %s87, %s90
    %p99 = scmp.eq.s32.totalorder %s14, 7
    %p100 = por %p98, %p99
    %p101 = scmp.ne.s32.totalorder %s90, %s91
    %p102 = scmp.eq.s32.totalorder %s14, 0
    %p103 = por %p101, %p102
    %p104 = scmp.ne.s32.totalorder %s90, %s91
    %p105 = scmp.eq.s32.totalorder %s15, 7
    %p106 = por %p104, %p105
    %p108 = scmp.ne.s32.totalorder %s91, %s107
    %p109 = scmp.eq.s32.totalorder %s15, 0
    %p110 = por %p108, %p109
    %p111 = scmp.le.s32.totalorder 1, %s9
    %p112 = scmp.lt.s32.totalorder %s9, 9
    %p113 = pnand %p111, %p112
    %p114 = pneg %p113
    // Predicated region
    $region9: #{_deepwalk_forward.1} parent=5 // pred_check
      _
    $region10: #{_deepwalk_forward.1} parent=5 // pred_check_branch
      %116 = sbr.rel (%p113) target = $region12
    $region11: #{_deepwalk_forward.1} parent=5 // pred_region
      %s117 = ssub.s32 %s9, 1
      // Predicated region
      $region13: #{_deepwalk_forward.1} parent=11 // pred_check
        %p118 = pneg %p56
      $region14: #{_deepwalk_forward.1} parent=11 // pred_check_branch
        %120 = sbr.rel (%p118) target = $region16
      $region15: #{_deepwalk_forward.1} parent=11 // pred_region
        _
      $region16: #{_deepwalk_forward.1} parent=11 // pred_fallthru
        _
      // Predicated region
      $region17: #{_deepwalk_forward.1} parent=11 // pred_check
        %p121 = pneg %p77
      $region18: #{_deepwalk_forward.1} parent=11 // pred_check_branch
        %123 = sbr.rel (%p121) target = $region20
      $region19: #{_deepwalk_forward.1} parent=11 // pred_region
        _
      $region20: #{_deepwalk_forward.1} parent=11 // pred_fallthru
        _
    $region12: #{_deepwalk_forward.1} parent=5 // pred_fallthru
      _
    %p124 = scmp.lt.s32.totalorder %s9, 8
    // Predicated region
    $region21: #{_deepwalk_forward.1} parent=5 // pred_check
      %p125 = pneg %p124
    $region22: #{_deepwalk_forward.1} parent=5 // pred_check_branch
      %127 = sbr.rel (%p125) target = $region24
    $region23: #{_deepwalk_forward.1} parent=5 // pred_region
      // Predicated region
      $region25: #{_deepwalk_forward.1} parent=23 // pred_check
        %p128 = pneg %p29
      $region26: #{_deepwalk_forward.1} parent=23 // pred_check_branch
        %130 = sbr.rel (%p128) target = $region28
      $region27: #{_deepwalk_forward.1} parent=23 // pred_region
        %p131 = scmp.lt.s32.totalorder %s9, 7
        %s132 = scalar_select %p131, %s9, 7
        %s133 = smul.addr %s132, 2
        %s134 = smul.addr %s133, 8
        %s135 = scalar_lea.vmem %s0, %s134
      $region28: #{_deepwalk_forward.1} parent=23 // pred_fallthru
        _
    $region24: #{_deepwalk_forward.1} parent=5 // pred_fallthru
      _
    %p136 = scmp.le.s32.totalorder 1, %s9
    %p137 = scmp.lt.s32.totalorder %s9, 9
    %p138 = pnand %p136, %p137
    %p139 = pneg %p138
    // Predicated region
    $region29: #{_deepwalk_forward.1} parent=5 // pred_check
      _
    $region30: #{_deepwalk_forward.1} parent=5 // pred_check_branch
      %141 = sbr.rel (%p138) target = $region32
    $region31: #{_deepwalk_forward.1} parent=5 // pred_region
      %s142 = ssub.s32 %s9, 1
      %p143 = scmp.lt.s32.totalorder %s14, 7
      %s144 = scalar_select %p143, %s14, 7
      %s145 = smul.addr %s144, 2
      %s146 = smul.addr %s145, 8
      %s147 = scalar_lea.vmem %s0, %s146
      %p148 = pneg %p35
      %p149 = pneg %p32
      %p150 = pneg %p56
      %p151 = pneg %p53
      %p152 = pneg %p77
      %p153 = pneg %p74
      %p154 = pneg %p103
      %p155 = pneg %p100
      %p156 = scmp.lt.s32.totalorder %s14, 7
      %s157 = scalar_select %p156, %s14, 7
      %s158 = smul.addr %s157, 2
      %s159 = smul.addr %s158, 8
      %s160 = scalar_lea.vmem %s3, %s159
      %p161 = scmp.lt.s32.totalorder %s14, 7
      %s162 = scalar_select %p161, %s14, 7
      %s163 = smul.addr %s162, 2
      %s164 = smul.addr %s163, 8
      %s165 = scalar_lea.vmem %s0, %s164
      %p166 = scmp.lt.s32.totalorder %s14, 7
      %s167 = scalar_select %p166, %s14, 7
      %s168 = smul.addr %s167, 2
      %s169 = smul.addr %s168, 8
      %s170 = scalar_lea.vmem %s3, %s169
      %v171 = vld [vmem:[%s165] sm:$0xff]
      %v172 = vld [vmem:[%s165 + $0x8] sm:$0xff]
      %v173 = vlaneseq
      %v174 = vand.u32 %v173, 127
      %175 = vset.pattern.permute.xlu0 0
      %176 = vperm.xlu0 %175, %v171
      %v177 = vpop.permute.xlu0 %176
      %178 = vset.pattern.permute.xlu0 0
      %179 = vperm.xlu0 %178, %v172
      %v180 = vpop.permute.xlu0 %179
      %vm181 = vcmp.eq.s32.totalorder %v174, %v177
      %vm182 = vcmp.eq.s32.totalorder %v174, %v180
      %v183 = vsel %vm181, 1, 0
      %v184 = vsel %vm182, 1, 0
      %v185 = vcvt.s32.f32 %v183
      %v186 = vcvt.s32.f32 %v184
      %v187 = vld [vmem:[%s1] sm:$0xff]
      %v188 = vld [vmem:[%s1 + $0x8] sm:$0xff]
      %v189 = vld [vmem:[%s1 + $0x10] sm:$0xff]
      %v190 = vld [vmem:[%s1 + $0x18] sm:$0xff]
      %v191 = vld [vmem:[%s1 + $0x20] sm:$0xff]
      %v192 = vld [vmem:[%s1 + $0x28] sm:$0xff]
      %v193 = vld [vmem:[%s1 + $0x30] sm:$0xff]
      %v194 = vld [vmem:[%s1 + $0x38] sm:$0xff]
      %v195 = vld [vmem:[%s1 + $0x40] sm:$0xff]
      %v196 = vld [vmem:[%s1 + $0x48] sm:$0xff]
      %v197 = vld [vmem:[%s1 + $0x50] sm:$0xff]
      %v198 = vld [vmem:[%s1 + $0x58] sm:$0xff]
      %v199 = vld [vmem:[%s1 + $0x60] sm:$0xff]
      %v200 = vld [vmem:[%s1 + $0x68] sm:$0xff]
      %v201 = vld [vmem:[%s1 + $0x70] sm:$0xff]
      %v202 = vld [vmem:[%s1 + $0x78] sm:$0xff]
      %203 = vmatpush.msra.mxu0 %v202
      %204 = vmatpush.msra.mxu0 %v201
      %205 = vmatpush.msra.mxu0 %v200
      %206 = vmatpush.msra.mxu0 %v199
      %207 = vmatpush.msra.mxu0 %v198
      %208 = vmatpush.msra.mxu0 %v197
      %209 = vmatpush.msra.mxu0 %v196
      %210 = vmatpush.msra.mxu0 %v195
      %211 = vmatpush.msra.mxu0 %v194
      %212 = vmatpush.msra.mxu0 %v193
      %213 = vmatpush.msra.mxu0 %v192
      %214 = vmatpush.msra.mxu0 %v191
      %215 = vmatpush.msra.mxu0 %v190
      %216 = vmatpush.msra.mxu0 %v189
      %217 = vmatpush.msra.mxu0 %v188
      %218 = vmatpush.msra.mxu0 %v187
      %219 = vmatmul.f32.gmra.mxu0 %v185
      %v220 = vpop.f32.mrf.mxu0
      %v221 = vadd.f32 0.0, %v220
      %222 = vmatmul.f32.gmra.mxu0 %v186
      %v223 = vpop.f32.mrf.mxu0
      %v224 = vadd.f32 0.0, %v223
      %225 = vdwg.mxu0
      %v226 = vld [vmem:[%s2] sm:$0xff]
      %v227 = vld [vmem:[%s2 + $0x8] sm:$0xff]
      %v228 = vld [vmem:[%s2 + $0x10] sm:$0xff]
      %v229 = vld [vmem:[%s2 + $0x18] sm:$0xff]
      %vm230 = vcmask 261120
      %v232 = vsel %vm230, %v221, 0
      %v235 = vsel %vm230, %v224, 0
      %237 = vmatpush.msra.mxu0 0.0
      %238 = vmatpush.msra.mxu0 0.0
      %239 = vmatpush.msra.mxu0 0.0
      %240 = vmatpush.msra.mxu0 0.0
      %241 = vmatpush.msra.mxu0 0.0
      %242 = vmatpush.msra.mxu0 0.0
      %243 = vmatpush.msra.mxu0 0.0
      %244 = vmatpush.msra.mxu0 0.0
      %245 = vmatpush.msra.mxu0 0.0
      %246 = vmatpush.msra.mxu0 0.0
      %247 = vmatpush.msra.mxu0 0.0
      %248 = vmatpush.msra.mxu0 0.0
      %249 = vmatpush.msra.mxu0 %v229
      %250 = vmatpush.msra.mxu0 %v228
      %251 = vmatpush.msra.mxu0 %v227
      %252 = vmatpush.msra.mxu0 %v226
      %253 = vmatmul.f32.gmra.mxu0 %v232
      %v254 = vpop.f32.mrf.mxu0
      %v255 = vadd.f32 0.0, %v254
      %256 = vmatmul.f32.gmra.mxu0 %v235
      %v257 = vpop.f32.mrf.mxu0
      %v258 = vadd.f32 0.0, %v257
      %259 = vdwg.mxu0
      %260 = vst [vmem:[%s170] sm:$0xff] %v255
      %261 = vst [vmem:[%s170 + $0x8] sm:$0xff] %v258
      %p262 = scmp.lt.s32.totalorder %s14, 7
      %s263 = scalar_select %p262, %s14, 7
      %s264 = smul.addr %s263, 2
      %s265 = smul.addr %s264, 8
      %s266 = scalar_lea.vmem %s3, %s265
      // Predicated region
      $region33: #{_deepwalk_forward.1} parent=31 // pred_check
        %p267 = pneg %p100
      $region34: #{_deepwalk_forward.1} parent=31 // pred_check_branch
        %269 = sbr.rel (%p267) target = $region36
      $region35: #{_deepwalk_forward.1} parent=31 // pred_region
        _
      $region36: #{_deepwalk_forward.1} parent=31 // pred_fallthru
        _
    $region32: #{_deepwalk_forward.1} parent=5 // pred_fallthru
      _
    %p270 = scmp.le.s32.totalorder 2, %s9
    // Predicated region
    $region37: #{_deepwalk_forward.1} parent=5 // pred_check
      %p271 = pneg %p270
    $region38: #{_deepwalk_forward.1} parent=5 // pred_check_branch
      %273 = sbr.rel (%p271) target = $region40
    $region39: #{_deepwalk_forward.1} parent=5 // pred_region
      %s274 = ssub.s32 %s9, 2
      // Predicated region
      $region41: #{_deepwalk_forward.1} parent=39 // pred_check
        %p275 = pneg %p106
      $region42: #{_deepwalk_forward.1} parent=39 // pred_check_branch
        %277 = sbr.rel (%p275) target = $region44
      $region43: #{_deepwalk_forward.1} parent=39 // pred_region
        %p278 = scmp.lt.s32.totalorder %s15, 7
        %s279 = scalar_select %p278, %s15, 7
        %s280 = smul.addr %s279, 2
        %s281 = smul.addr %s280, 8
        %s282 = scalar_lea.vmem %s3, %s281
      $region44: #{_deepwalk_forward.1} parent=39 // pred_fallthru
        _
    $region40: #{_deepwalk_forward.1} parent=5 // pred_fallthru
      _
  $region6: #{_deepwalk_forward.1} parent=0 // loop_footer
    %s13 = sadd.s32 1, %s9
  $region7: #{_deepwalk_forward.1} parent=0 // loop_footer_branch
    %8 = sbr.rel target = $region3
  $region8: #{_deepwalk_forward.1} parent=0 // loop_exit
    _

</llo_original>
